<compile_context>
chip_gen: v6e
topology: v6e:2x2x1
jax: 0.10.0
libtpu: 0.0.40
codegen_flags: <defaults>
</compile_context>

<pallas_src>
import functools

import jax
import jax.numpy as jnp
from jax.experimental import pallas as pl
from jax.experimental.pallas import tpu as pltpu


def _cdiv(a, b):
    return -(-a // b)


def _round_up(x, m):
    return _cdiv(x, m) * m


def _vmem_capacity_bytes():
    try:
        return int(pltpu.get_tpu_info().vmem_capacity_bytes)
    except Exception:
        return 64 * 1024 * 1024  # conservative fallback (v7x per-TC VMEM)


def _choose_tile_n(n, hw, c, itemsize):
    """Pick the proposal-axis tile TN from a generation-aware VMEM budget."""
    vmem_cap = _vmem_capacity_bytes()
    # ~1/6 of VMEM per x tile (double-buffered -> ~1/3), leaving room for the
    # resident weight/bias, output tiles and compiler scratch.
    #   v5e/v6e (128 MiB) -> ~21 MiB tiles;  v7x (64 MiB) -> ~10.5 MiB tiles.
    budget = max(8 * 1024 * 1024, min(24 * 1024 * 1024, vmem_cap // 6))
    row_bytes = max(1, hw * c * itemsize)

    tn = max(8, (budget // row_bytes // 8) * 8)          # VMEM-budget bound only

    # Megacore: prefer >= 4 grid steps when N is large enough, but never shrink
    # a tile below ~4 MiB (where per-step overhead starts eating HBM roofline).
    n8 = _round_up(n, 8)
    min_rows = max(8, ((4 * 1024 * 1024) // row_bytes // 8) * 8)
    steps_cap = max(min_rows, _round_up(_cdiv(n8, 4), 8))
    tn = min(tn, steps_cap)
    return int(min(tn, n8))


def _fastrcnn_predictor_kernel(x_ref, wt_ref, b_ref, logit_ref, feat_ref, *,
                               inv_hw):
    # x_ref:     (TN, C, HW)  native NCHW layout: HW on lanes, C on sublanes
    # wt_ref:    (C, Kp)      weight transposed, K zero-padded to a 128 multiple
    # b_ref:     (1, Kp)
    # logit_ref: (TN, Kp)
    # feat_ref:  (TN, C)
    # Global average pool: lane-axis reduce with f32 accumulation, scale by 1/HW.
    pooled = jnp.sum(x_ref[...], axis=2, dtype=jnp.float32) * inv_hw    # (TN, C)
    feat_ref[...] = pooled.astype(feat_ref.dtype)
    # Linear layer on the MXU: native-dtype operands, f32 accumulation.
    logits = jnp.dot(pooled.astype(wt_ref.dtype), wt_ref[...],
                     preferred_element_type=jnp.float32)
    logits = logits + b_ref[...].astype(jnp.float32)
    logit_ref[...] = logits.astype(logit_ref.dtype)


def fastrcnn_relation_predictor(x_nchw, weight, bias):
    """x_nchw: [N, C, H, W]; weight: [K, C]; bias: [K] -> (logits [N,K], feats [N,C])."""
    N, C, H, W = x_nchw.shape
    K = weight.shape[0]
    HW = H * W
    dtype = x_nchw.dtype
    itemsize = jnp.dtype(dtype).itemsize

    # Metadata-only reshape of the native NCHW buffer (no HBM pass).
    x_flat = x_nchw.reshape(N, C, HW)

    # Pad K (classes) to a multiple of 128: unmasked lane-dense logit stores.
    Kp = _round_up(K, 128)
    wt = jnp.zeros((C, Kp), dtype=weight.dtype).at[:, :K].set(weight.T)
    b2 = jnp.zeros((1, Kp), dtype=bias.dtype).at[:, :K].set(bias.reshape(1, K))

    TN = _choose_tile_n(N, HW, C, itemsize)
    grid = (_cdiv(N, TN),)   # ragged last block handled by Pallas masking

    # VMEM limit: derived from the actual working set, capped at ~0.75 of the
    # physical VMEM of this generation.
    w_bytes = C * Kp * jnp.dtype(weight.dtype).itemsize
    b_bytes = Kp * jnp.dtype(bias.dtype).itemsize
    need = (2 * TN * C * HW * itemsize          # double-buffered x tiles
            + 2 * (w_bytes + b_bytes)           # resident weight / bias
            + 2 * TN * (Kp + C) * itemsize      # double-buffered output tiles
            + (2 << 20))                        # compiler scratch headroom
    vmem_cap = _vmem_capacity_bytes()
    vmem_limit = int(min(vmem_cap * 3 // 4,
                         max(32 * 1024 * 1024, need * 5 // 4)))

    kernel = functools.partial(_fastrcnn_predictor_kernel, inv_hw=1.0 / HW)

    logits_p, feats = pl.pallas_call(
        kernel,
        out_shape=(
            jax.ShapeDtypeStruct((N, Kp), dtype),
            jax.ShapeDtypeStruct((N, C), dtype),
        ),
        grid=grid,
        in_specs=[
            pl.BlockSpec((TN, C, HW), lambda i: (i, 0, 0)),
            pl.BlockSpec((C, Kp), lambda i: (0, 0)),   # weight: VMEM resident
            pl.BlockSpec((1, Kp), lambda i: (0, 0)),   # bias: VMEM resident
        ],
        out_specs=(
            pl.BlockSpec((TN, Kp), lambda i: (i, 0)),
            pl.BlockSpec((TN, C), lambda i: (i, 0)),
        ),
        compiler_params=pltpu.CompilerParams(
            dimension_semantics=("parallel",),   # megacore-shard N on v7x
            vmem_limit_bytes=vmem_limit,
        ),
    )(x_flat, wt, b2)

    return logits_p[:, :K], feats


def reference(x_nchw, weight, bias):
    pooled = jnp.mean(x_nchw, axis=(2, 3))             # [N, C]
    logits = pooled @ weight.T + bias                  # [N, K]
    return logits, pooled


if __name__ == "__main__":
    key = jax.random.PRNGKey(0)
    kx, kw = jax.random.split(key)

    # Small shapes consistent with the module: N proposals, C=in_channels map.
    N, C, H, W = 2, 4, 16, 16
    NUM_CLASSES = 8

    x = jax.random.normal(kx, (N, C, H, W), dtype=jnp.float32)
    # nn.init.normal_(weight, mean=0, std=0.01); nn.init.constant_(bias, 0)
    weight = 0.01 * jax.random.normal(kw, (NUM_CLASSES, C), dtype=jnp.float32)
    bias = jnp.zeros((NUM_CLASSES,), dtype=jnp.float32)

    logits, feats = fastrcnn_relation_predictor(x, weight, bias)
    jax.block_until_ready((logits, feats))

    ref_logits, ref_feats = reference(x, weight, bias)
    assert logits.shape == (N, NUM_CLASSES) and feats.shape == (N, C)
    assert jnp.allclose(logits, ref_logits, atol=1e-5, rtol=1e-5)
    assert jnp.allclose(feats, ref_feats, atol=1e-5, rtol=1e-5)

    print("KERNEL_OK")
</pallas_src>

<mosaic_0001>
module attributes {stable_mosaic.version = 11 : i64} {
  func.func @_fastrcnn_predictor_kernel(%arg0: i32, %arg1: memref<8x4x256xf32, #tpu.memory_space<vmem>>, %arg2: memref<4x128xf32, #tpu.memory_space<vmem>>, %arg3: memref<1x128xf32, #tpu.memory_space<vmem>>, %arg4: memref<8x128xf32, #tpu.memory_space<vmem>>, %arg5: memref<8x4xf32, #tpu.memory_space<vmem>>) attributes {dimension_semantics = [#tpu.dimension_semantics<parallel>], iteration_bounds = array<i64: 1>, scalar_prefetch = 0 : i64, scratch_operands = 0 : i64, tpu.core_type = #tpu.core_type<tc>, window_params = [{transform_indices = @transform_0, window_bounds = array<i64: 8, 4, 256>}, {pipeline_mode = #tpu.pipeline_mode<synchronous>, transform_indices = @transform_1, window_bounds = array<i64: 4, 128>}, {pipeline_mode = #tpu.pipeline_mode<synchronous>, transform_indices = @transform_2, window_bounds = array<i64: 1, 128>}, {transform_indices = @transform_3, window_bounds = array<i64: 8, 128>}, {transform_indices = @transform_4, window_bounds = array<i64: 8, 4>}]} {
    %c0 = arith.constant 0 : index
    %c0_0 = arith.constant 0 : index
    %c0_1 = arith.constant 0 : index
    %0 = vector.load %arg1[%c0, %c0_0, %c0_1] : memref<8x4x256xf32, #tpu.memory_space<vmem>>, vector<8x4x256xf32>
    %cst = arith.constant dense<0.000000e+00> : vector<8x4xf32>
    %1 = vector.multi_reduction <add>, %0, %cst [2] : vector<8x4x256xf32> to vector<8x4xf32>
    %cst_2 = arith.constant 3.906250e-03 : f32
    %2 = vector.broadcast %cst_2 : f32 to vector<8x4xf32>
    %3 = arith.mulf %1, %2 : vector<8x4xf32>
    %c0_3 = arith.constant 0 : index
    %c0_4 = arith.constant 0 : index
    %4 = vector.load %arg5[%c0_3, %c0_4] : memref<8x4xf32, #tpu.memory_space<vmem>>, vector<8x4xf32>
    tpu.vector_store %arg5[%c0_3, %c0_4], %3 {strides = array<i32>} : memref<8x4xf32, #tpu.memory_space<vmem>>, vector<8x4xf32>,
    %c0_5 = arith.constant 0 : index
    %c0_6 = arith.constant 0 : index
    %5 = vector.load %arg2[%c0_5, %c0_6] : memref<4x128xf32, #tpu.memory_space<vmem>>, vector<4x128xf32>
    %cst_7 = arith.constant dense<0.000000e+00> : vector<8x128xf32>
    %6 = tpu.matmul %3, %5, %cst_7 {dimension_numbers = #tpu.dot_dimension_numbers<[1], [0], [0], [1], [0, 0, 1, 1], [], []>} : vector<8x4xf32>, vector<4x128xf32>, vector<8x128xf32> -> vector<8x128xf32>
    %c0_8 = arith.constant 0 : index
    %c0_9 = arith.constant 0 : index
    %7 = vector.load %arg3[%c0_8, %c0_9] : memref<1x128xf32, #tpu.memory_space<vmem>>, vector<1x128xf32>
    %8 = vector.broadcast %7 : vector<1x128xf32> to vector<8x128xf32>
    %9 = arith.addf %6, %8 : vector<8x128xf32>
    %c0_10 = arith.constant 0 : index
    %c0_11 = arith.constant 0 : index
    %10 = vector.load %arg4[%c0_10, %c0_11] : memref<8x128xf32, #tpu.memory_space<vmem>>, vector<8x128xf32>
    tpu.vector_store %arg4[%c0_10, %c0_11], %9 {strides = array<i32>} : memref<8x128xf32, #tpu.memory_space<vmem>>, vector<8x128xf32>,
    return
  }
  func.func @transform_0(%arg0: i32) -> (i32, i32, i32) {
    %c0_i32 = arith.constant 0 : i32
    %c0_i32_0 = arith.constant 0 : i32
    %c0_i32_1 = arith.constant 0 : i32
    return %arg0, %c0_i32, %c0_i32_0 : i32, i32, i32
  }
  func.func @transform_1(%arg0: i32) -> (i32, i32) {
    %c0_i32 = arith.constant 0 : i32
    %c0_i32_0 = arith.constant 0 : i32
    %c0_i32_1 = arith.constant 0 : i32
    return %c0_i32, %c0_i32_0 : i32, i32
  }
  func.func @transform_2(%arg0: i32) -> (i32, i32) {
    %c0_i32 = arith.constant 0 : i32
    %c0_i32_0 = arith.constant 0 : i32
    %c0_i32_1 = arith.constant 0 : i32
    return %c0_i32, %c0_i32_0 : i32, i32
  }
  func.func @transform_3(%arg0: i32) -> (i32, i32) {
    %c0_i32 = arith.constant 0 : i32
    %c0_i32_0 = arith.constant 0 : i32
    return %arg0, %c0_i32 : i32, i32
  }
  func.func @transform_4(%arg0: i32) -> (i32, i32) {
    %c0_i32 = arith.constant 0 : i32
    %c0_i32_0 = arith.constant 0 : i32
    return %arg0, %c0_i32 : i32, i32
  }
}

</mosaic_0001>

<llo_original>
// kernel: tpu_custom_call.1
$region0: #{tpu_custom_call.1}
  #allocation0 [shape = 'u32[]', space=smem, size = 0x4, offset = 0x4, fixed_abs, tag = 'smem constant byte address 0x4 - core index']
  #allocation1 [shape = 'u32[144,128]{1,0:T(1,128)}', space=vmem, size = 0x12000, scoped, tag = 'internal scratch']
  %s0 = inlined_call_operand.hbm [shape: f32[2,4,256], index: 0, kind: input, shape index: {}]
  %s1 = inlined_call_operand.hbm [shape: f32[4,128], index: 1, kind: input, shape index: {}]
  %s2 = inlined_call_operand.vmem [shape: f32[1,128], index: 2, kind: input, shape index: {}]
  %s3 = inlined_call_operand.hbm [shape: f32[2,128], index: 3, kind: output, shape index: {0}]
  %s4 = inlined_call_operand.hbm [shape: f32[2,4], index: 4, kind: output, shape index: {1}]
  %5 = xla_tuple %s3, %s4
  %s6 = sld [smem:[#allocation0]]
  $region38: #{tpu_custom_call.1} parent=0
    _
  %s8 = ssub.s32 1, %s6
  %s9 = scalar_select 0, %s8, %s6
  $region1: #{tpu_custom_call.1} parent=0
    #allocation2 [shape = 'u8[32768]{0}', space=vmem, size = 0x8000, scoped, tag = 'input window, operand 0, single buffered']
    #allocation3 [shape = 's32[1]{0}', space=sflag, size = 0x4, scoped, tag = 'scoped memory for tpu_custom_call.1']
    #allocation4 [shape = 's32[1]{0}', space=sflag, size = 0x4, scoped, tag = 'scoped memory for tpu_custom_call.1']
    #allocation5 [shape = 'u8[2048]{0}', space=vmem, size = 0x800, scoped, tag = 'input window, operand 1, single buffered']
    #allocation6 [shape = 's32[1]{0}', space=sflag, size = 0x4, scoped, tag = 'scoped memory for tpu_custom_call.1']
    #allocation7 [shape = 'u8[4096]{0}', space=vmem, size = 0x1000, scoped, tag = 'output window, operand 0, single buffered']
    #allocation8 [shape = 'u8[4096]{0}', space=vmem, size = 0x1000, scoped, tag = 'output window, operand 1, single buffered']
    #allocation9 [shape = 's32[1]{0}', space=sflag, size = 0x4, scoped, tag = 'scoped memory for tpu_custom_call.1']
    %10 = vsyncpa [#allocation3], 0
    %11 = vsyncpa [#allocation6], 0
    %12 = vsyncpa [#allocation4], 0
    %13 = vsyncpa [#allocation9], 0
    // Predicated region
    $region2: #{tpu_custom_call.1} parent=1 // pred_check
      _
    $region3: #{tpu_custom_call.1} parent=1 // pred_check_branch
      %15 = sbr.rel (0) target = $region5
    $region4: #{tpu_custom_call.1} parent=1 // pred_region
      %s17 = ssub.s32 1024, 256
      %18 = vsyncadd [#allocation3], %s17
      %s19 = sshll.u32 [#allocation2], 4
      %s20 = int_to_ptr.vmem [resolvable:$true] %s19
      %25 = dma.hbm_to_vmem [thread:$0]  %s0, 256, %s20, [#allocation3], 128, 128, 8
    $region5: #{tpu_custom_call.1} parent=1 // pred_fallthru
      _
    // Predicated region
    $region6: #{tpu_custom_call.1} parent=1 // pred_check
      _
    $region7: #{tpu_custom_call.1} parent=1 // pred_check_branch
      %27 = sbr.rel (0) target = $region9
    $region8: #{tpu_custom_call.1} parent=1 // pred_region
      %s29 = ssub.s32 64, 64
      %30 = vsyncadd [#allocation6], %s29
      %s32 = sshll.u32 [#allocation5], 4
      %s33 = int_to_ptr.vmem [resolvable:$true] %s32
      %35 = dma.hbm_to_vmem [thread:$0]  %s1, 64, %s33, [#allocation6]
    $region9: #{tpu_custom_call.1} parent=1 // pred_fallthru
      _
    // Predicated region
    $region10: #{tpu_custom_call.1} parent=1 // pred_check
      _
    $region11: #{tpu_custom_call.1} parent=1 // pred_check_branch
      %37 = sbr.rel (0) target = $region13
    $region12: #{tpu_custom_call.1} parent=1 // pred_region
      _
    $region13: #{tpu_custom_call.1} parent=1 // pred_fallthru
      _
    // Predicated region
    $region14: #{tpu_custom_call.1} parent=1 // pred_check
      _
    $region15: #{tpu_custom_call.1} parent=1 // pred_check_branch
      %39 = sbr.rel (0) target = $region17
    $region16: #{tpu_custom_call.1} parent=1 // pred_region
      %40 = dma.done [#allocation3], 1024
    $region17: #{tpu_custom_call.1} parent=1 // pred_fallthru
      _
    // Predicated region
    $region18: #{tpu_custom_call.1} parent=1 // pred_check
      _
    $region19: #{tpu_custom_call.1} parent=1 // pred_check_branch
      %42 = sbr.rel (0) target = $region21
    $region20: #{tpu_custom_call.1} parent=1 // pred_region
      %43 = dma.done [#allocation6], 64
    $region21: #{tpu_custom_call.1} parent=1 // pred_fallthru
      _
    %v44 = vld [vmem:[#allocation2] sm:$0xff]
    %v45 = vld [vmem:[#allocation2 + $0x8] sm:$0xff]
    %v46 = vld [vmem:[#allocation2 + $0x10] sm:$0xff]
    %v47 = vld [vmem:[#allocation2 + $0x18] sm:$0xff]
    %v48 = vld [vmem:[#allocation2 + $0x20] sm:$0xff]
    %v49 = vld [vmem:[#allocation2 + $0x28] sm:$0xff]
    %v50 = vld [vmem:[#allocation2 + $0x30] sm:$0xff]
    %v51 = vld [vmem:[#allocation2 + $0x38] sm:$0xff]
    %v60 = vcombine.high %v44, %v44
    %v61 = vcombine.high %v45, %v45
    %v62 = vcombine.high %v46, %v46
    %v63 = vcombine.high %v47, %v47
    %v64 = vcombine.high %v48, %v48
    %v65 = vcombine.high %v49, %v49
    %v66 = vcombine.high %v50, %v50
    %v67 = vcombine.high %v51, %v51
    %vm76 = vcmask 1043456
    %v77 = vsel %vm76, %v44, 0.0
    %v78 = vsel %vm76, %v60, 0.0
    %v79 = vadd.f32 %v77, %v78
    %80 = vadd.xlane.f32.xlu0 %v79
    %v81 = vpop.xlane.xlu0 %80
    %v82 = vsel %vm76, %v45, 0.0
    %v83 = vsel %vm76, %v61, 0.0
    %v84 = vadd.f32 %v82, %v83
    %85 = vadd.xlane.f32.xlu0 %v84
    %v86 = vpop.xlane.xlu0 %85
    %v87 = vsel %vm76, %v46, 0.0
    %v88 = vsel %vm76, %v62, 0.0
    %v89 = vadd.f32 %v87, %v88
    %90 = vadd.xlane.f32.xlu0 %v89
    %v91 = vpop.xlane.xlu0 %90
    %v92 = vsel %vm76, %v47, 0.0
    %v93 = vsel %vm76, %v63, 0.0
    %v94 = vadd.f32 %v92, %v93
    %95 = vadd.xlane.f32.xlu0 %v94
    %v96 = vpop.xlane.xlu0 %95
    %v97 = vsel %vm76, %v48, 0.0
    %v98 = vsel %vm76, %v64, 0.0
    %v99 = vadd.f32 %v97, %v98
    %100 = vadd.xlane.f32.xlu0 %v99
    %v101 = vpop.xlane.xlu0 %100
    %v102 = vsel %vm76, %v49, 0.0
    %v103 = vsel %vm76, %v65, 0.0
    %v104 = vadd.f32 %v102, %v103
    %105 = vadd.xlane.f32.xlu0 %v104
    %v106 = vpop.xlane.xlu0 %105
    %v107 = vsel %vm76, %v50, 0.0
    %v108 = vsel %vm76, %v66, 0.0
    %v109 = vadd.f32 %v107, %v108
    %110 = vadd.xlane.f32.xlu0 %v109
    %v111 = vpop.xlane.xlu0 %110
    %v112 = vsel %vm76, %v51, 0.0
    %v113 = vsel %vm76, %v67, 0.0
    %v114 = vadd.f32 %v112, %v113
    %115 = vadd.xlane.f32.xlu0 %v114
    %v116 = vpop.xlane.xlu0 %115
    %v117 = vmul.f32 %v81, 0.00390625
    %v118 = vmul.f32 %v86, 0.00390625
    %v119 = vmul.f32 %v91, 0.00390625
    %v120 = vmul.f32 %v96, 0.00390625
    %v121 = vmul.f32 %v101, 0.00390625
    %v122 = vmul.f32 %v106, 0.00390625
    %v123 = vmul.f32 %v111, 0.00390625
    %v124 = vmul.f32 %v116, 0.00390625
    %v133 = vlaneseq
    %v134 = vand.u32 %v133, 127
    %v135 = vlaneseq
    %v136 = vshrl.u32 %v135, 7
    %v137 = vsub.s32 %v134, %v136
    %v138 = vrot.slane %v117, %v137
    %v139 = vlaneseq
    %v140 = vshrl.u32 %v139, 7
    %v141 = vsub.s32 %v134, %v140
    %v142 = vrot.slane %v118, %v141
    %v143 = vlaneseq
    %v144 = vshrl.u32 %v143, 7
    %v145 = vsub.s32 %v134, %v144
    %v146 = vrot.slane %v119, %v145
    %v147 = vlaneseq
    %v148 = vshrl.u32 %v147, 7
    %v149 = vsub.s32 %v134, %v148
    %v150 = vrot.slane %v120, %v149
    %v151 = vlaneseq
    %v152 = vshrl.u32 %v151, 7
    %v153 = vsub.s32 %v134, %v152
    %v154 = vrot.slane %v121, %v153
    %v155 = vlaneseq
    %v156 = vshrl.u32 %v155, 7
    %v157 = vsub.s32 %v134, %v156
    %v158 = vrot.slane %v122, %v157
    %v159 = vlaneseq
    %v160 = vshrl.u32 %v159, 7
    %v161 = vsub.s32 %v134, %v160
    %v162 = vrot.slane %v123, %v161
    %v163 = vlaneseq
    %v164 = vshrl.u32 %v163, 7
    %v165 = vsub.s32 %v134, %v164
    %v166 = vrot.slane %v124, %v165
    %vm167 = vcmask 1041409
    %v168 = vsel %vm167, %v142, %v138
    %vm169 = vcmask 1042434
    %v170 = vsel %vm169, %v146, %v168
    %vm171 = vcmask 1043459
    %v172 = vsel %vm171, %v150, %v170
    %vm173 = vcmask 1044484
    %v174 = vsel %vm173, %v154, %v172
    %vm175 = vcmask 1045509
    %v176 = vsel %vm175, %v158, %v174
    %vm177 = vcmask 1046534
    %v178 = vsel %vm177, %v162, %v176
    %vm179 = vcmask 1047559
    %v180 = vsel %vm179, %v166, %v178
    %vm182 = vcmask 31744
    %183 = vst.msk [vmem:[#allocation8] sm:$0xff] %vm182, %v180
    %v184 = vld [vmem:[#allocation5] sm:$0xf]
    %v185 = vld [vmem:[%s2] sm:$0x1]
    %v187 = vlaneseq
    %v188 = vshrl.u32 %v187, 7
    %v189 = vsub.s32 0, %v188
    %v190 = vrot.slane %v185, %v189
    %v192 = vsel %vm182, %v180, 0
    %v195 = vsel %vm76, %v184, 0
    %197 = vmatprep.subr.mxu0 0.0
    %198 = vmatpush1.msra.mxu0 0.0
    %199 = vmatprep.subr.mxu0 0.0
    %200 = vmatpush1.msra.mxu0 0.0
    %201 = vmatprep.subr.mxu0 0.0
    %202 = vmatpush1.msra.mxu0 0.0
    %203 = vmatprep.subr.mxu0 0.0
    %204 = vmatpush1.msra.mxu0 0.0
    %205 = vmatprep.subr.mxu0 0.0
    %206 = vmatpush1.msra.mxu0 0.0
    %207 = vmatprep.subr.mxu0 0.0
    %208 = vmatpush1.msra.mxu0 0.0
    %209 = vmatprep.subr.mxu0 0.0
    %210 = vmatpush1.msra.mxu0 0.0
    %211 = vmatprep.subr.mxu0 0.0
    %212 = vmatpush1.msra.mxu0 0.0
    %213 = vmatprep.subr.mxu0 0.0
    %214 = vmatpush1.msra.mxu0 0.0
    %215 = vmatprep.subr.mxu0 0.0
    %216 = vmatpush1.msra.mxu0 0.0
    %217 = vmatprep.subr.mxu0 0.0
    %218 = vmatpush1.msra.mxu0 0.0
    %219 = vmatprep.subr.mxu0 0.0
    %220 = vmatpush1.msra.mxu0 0.0
    %221 = vmatprep.subr.mxu0 0.0
    %222 = vmatpush1.msra.mxu0 0.0
    %223 = vmatprep.subr.mxu0 0.0
    %224 = vmatpush1.msra.mxu0 0.0
    %225 = vmatprep.subr.mxu0 0.0
    %226 = vmatpush1.msra.mxu0 0.0
    %227 = vmatprep.subr.mxu0 0.0
    %228 = vmatpush1.msra.mxu0 %v195
    %229 = vmatprep.subr.mxu0 0.0
    %230 = vmatpush2.msra.mxu0 0.0
    %231 = vmatprep.subr.mxu0 0.0
    %232 = vmatpush2.msra.mxu0 0.0
    %233 = vmatprep.subr.mxu0 0.0
    %234 = vmatpush2.msra.mxu0 0.0
    %235 = vmatprep.subr.mxu0 0.0
    %236 = vmatpush2.msra.mxu0 0.0
    %237 = vmatprep.subr.mxu0 0.0
    %238 = vmatpush2.msra.mxu0 0.0
    %239 = vmatprep.subr.mxu0 0.0
    %240 = vmatpush2.msra.mxu0 0.0
    %241 = vmatprep.subr.mxu0 0.0
    %242 = vmatpush2.msra.mxu0 0.0
    %243 = vmatprep.subr.mxu0 0.0
    %244 = vmatpush2.msra.mxu0 0.0
    %245 = vmatprep.subr.mxu0 0.0
    %246 = vmatpush2.msra.mxu0 0.0
    %247 = vmatprep.subr.mxu0 0.0
    %248 = vmatpush2.msra.mxu0 0.0
    %249 = vmatprep.subr.mxu0 0.0
    %250 = vmatpush2.msra.mxu0 0.0
    %251 = vmatprep.subr.mxu0 0.0
    %252 = vmatpush2.msra.mxu0 0.0
    %253 = vmatprep.subr.mxu0 0.0
    %254 = vmatpush2.msra.mxu0 0.0
    %255 = vmatprep.subr.mxu0 0.0
    %256 = vmatpush2.msra.mxu0 0.0
    %257 = vmatprep.subr.mxu0 0.0
    %258 = vmatpush2.msra.mxu0 0.0
    %259 = vmatprep.subr.mxu0 0.0
    %260 = vmatpush2.msra.mxu0 0.0
    %261 = vmatprep.mubr.f32.mxu0 0.0
    %262 = vmatmul.mubr.f32.gmra.mxu0 %v192
    %v263 = vpop.f32.mrf.mxu0
    %v264 = vadd.f32 %v190, %v263
    %v265 = vpop.f32.mrf.mxu0
    %266 = vdwg.mxu0
    %267 = vst [vmem:[#allocation7] sm:$0xff] %v264
    // Predicated region
    $region22: #{tpu_custom_call.1} parent=1 // pred_check
      _
    $region23: #{tpu_custom_call.1} parent=1 // pred_check_branch
      %269 = sbr.rel (0) target = $region25
    $region24: #{tpu_custom_call.1} parent=1 // pred_region
      %s271 = ssub.s32 128, 32
      %272 = vsyncadd [#allocation4], %s271
      %s273 = sshll.u32 [#allocation7], 4
      %s274 = int_to_ptr.vmem [resolvable:$true] %s273
      %279 = dma.vmem_to_hbm [thread:$0]  %s274, 32, %s3, [#allocation4], 32, 32, 2
    $region25: #{tpu_custom_call.1} parent=1 // pred_fallthru
      _
    // Predicated region
    $region26: #{tpu_custom_call.1} parent=1 // pred_check
      _
    $region27: #{tpu_custom_call.1} parent=1 // pred_check_branch
      %281 = sbr.rel (0) target = $region29
    $region28: #{tpu_custom_call.1} parent=1 // pred_region
      %s283 = ssub.s32 128, 32
      %284 = vsyncadd [#allocation9], %s283
      %s285 = sshll.u32 [#allocation8], 4
      %s286 = int_to_ptr.vmem [resolvable:$true] %s285
      %291 = dma.vmem_to_hbm [thread:$0]  %s286, 32, %s4, [#allocation9], 32, 32, 2
    $region29: #{tpu_custom_call.1} parent=1 // pred_fallthru
      _
    // Predicated region
    $region30: #{tpu_custom_call.1} parent=1 // pred_check
      _
    $region31: #{tpu_custom_call.1} parent=1 // pred_check_branch
      %293 = sbr.rel (0) target = $region33
    $region32: #{tpu_custom_call.1} parent=1 // pred_region
      %294 = dma.done [#allocation4], 128
    $region33: #{tpu_custom_call.1} parent=1 // pred_fallthru
      _
    // Predicated region
    $region34: #{tpu_custom_call.1} parent=1 // pred_check
      _
    $region35: #{tpu_custom_call.1} parent=1 // pred_check_branch
      %296 = sbr.rel (0) target = $region37
    $region36: #{tpu_custom_call.1} parent=1 // pred_region
      %297 = dma.done [#allocation9], 128
    $region37: #{tpu_custom_call.1} parent=1 // pred_fallthru
      _
    %298 = vsyncpa [#allocation3], 1
    %299 = vsyncpa [#allocation6], 1
    %300 = vsyncpa [#allocation4], 1
    %301 = vsyncpa [#allocation9], 1

</llo_original>
